<compile_context>
chip_gen: v5e
topology: v5e:2x2
jax: 0.10.0
libtpu: 0.0.40
codegen_flags: <defaults>
</compile_context>

<pallas_src>
import math

import jax
import jax.numpy as jnp
from jax.experimental import pallas as pl
from jax.experimental.pallas import tpu as pltpu

NUM_HEADS = 8        # nn.MultiheadAttention(hidden, num_heads=8)
PATTERN_DIM = 64     # LiquidCell.W_pattern = nn.Linear(64, hidden)
DT = 0.1             # liquid dynamics time step

ROW_TILE_TARGET = 1024   # rows per layer-matmul block (raises arithmetic intensity)
KV_TILE_TARGET = 512     # KV tile for the online-softmax loop


def _vmem_limit_bytes():
    """Chip-aware VMEM budget: leave ~25% headroom, never above ~100 MiB."""
    cap = 128 * 1024 * 1024
    try:
        info = pltpu.get_tpu_info()
        cap = int(getattr(info, "vmem_capacity_bytes", cap) or cap)
    except Exception:
        pass
    return int(min(cap - cap // 4, 100 * 1024 * 1024))


def _pick_tile(n, target, align=8):
    """Largest divisor of n that is <= target and a multiple of `align`.
    Falls back to n itself (a full-extent block is always legal)."""
    if n <= target:
        return n
    for t in range(min(target, n), align - 1, -1):
        if n % t == 0 and t % align == 0:
            return t
    return n


# -----------------------------------------------------------------------------
# Kernel 1: stacked LiquidCell layers over flattened rows.
# -----------------------------------------------------------------------------
def liquid_layers_kernel(ctx_ref,     # (Rt, H)   f32
                         w_ref,       # (1, H, H) bf16  (W_in + W_rec)^T, streamed per layer
                         bias_ref,    # (1, 1, H) f32   folded bias (+ pattern contribution)
                         decay_ref,   # (1, 1, H) f32   exp(-dt/(tau+eps))
                         omd_ref,     # (1, 1, H) f32   1 - decay
                         state_ref):  # (Rt, H)   f32   OUTPUT block == liquid state accumulator
    l = pl.program_id(1)

    @pl.when(l == 0)
    def _():
        state_ref[...] = ctx_ref[...]

    # x <- decay*x + (1-decay)*tanh(x @ W_sum + bias)
    x = state_ref[...]
    comb = jnp.dot(x.astype(jnp.bfloat16), w_ref[0],
                   preferred_element_type=jnp.float32) + bias_ref[0]
    state_ref[...] = decay_ref[0] * x + omd_ref[0] * jnp.tanh(comb)


# -----------------------------------------------------------------------------
# Kernel 2: multi-head self-attention (KV-tiled online softmax) + folded
#           (out_proj o output_projection) matmul.
# -----------------------------------------------------------------------------
def attention_kernel(xq_ref,    # (1, S, H)  f32  full sequence (for Q)
                     xkv_ref,   # (1, TK, H) f32  current KV tile
                     wq_ref,    # (H, H)     bf16
                     bq_ref,    # (1, H)     f32
                     wkv_ref,   # (H, 2H)    bf16  [Wk^T | Wv^T]
                     bv_ref,    # (1, H)     f32
                     wo_ref,    # (H, H)     bf16  out_proj^T @ final^T (folded)
                     bo_ref,    # (1, H)     f32   folded bias
                     out_ref,   # (1, S, H)  f32
                     q_scr,     # (NH, S, HD) bf16
                     m_scr,     # (NH, S, 1)  f32
                     l_scr,     # (NH, S, 1)  f32
                     acc_scr):  # (NH, S, HD) f32
    kv = pl.program_id(1)
    nkv = pl.num_programs(1)
    num_heads, seq, head_dim = acc_scr.shape
    hidden = xq_ref.shape[-1]
    scale = 1.0 / math.sqrt(head_dim)

    @pl.when(kv == 0)
    def _():
        # One lane-dense (S,H)@(H,H) projection for Q; softmax scale folded in.
        q = jnp.dot(xq_ref[0].astype(jnp.bfloat16), wq_ref[...],
                    preferred_element_type=jnp.float32) + bq_ref[...]
        q = q * scale
        q_scr[...] = jnp.transpose(q.reshape(seq, num_heads, head_dim),
                                   (1, 0, 2)).astype(jnp.bfloat16)
        m_scr[...] = jnp.full(m_scr.shape, -jnp.inf, m_scr.dtype)
        l_scr[...] = jnp.zeros(l_scr.shape, l_scr.dtype)
        acc_scr[...] = jnp.zeros(acc_scr.shape, acc_scr.dtype)

    # Fused K/V projection of the current KV tile (key bias dropped: it only
    # shifts every softmax row by a constant and cancels exactly).
    kv_p = jnp.dot(xkv_ref[0].astype(jnp.bfloat16), wkv_ref[...],
                   preferred_element_type=jnp.float32)            # (TK, 2H)
    tk = kv_p.shape[0]
    k = kv_p[:, :hidden]
    v = kv_p[:, hidden:] + bv_ref[...]
    kh = jnp.transpose(k.reshape(tk, num_heads, head_dim), (1, 0, 2)).astype(jnp.bfloat16)
    vh = jnp.transpose(v.reshape(tk, num_heads, head_dim), (1, 0, 2)).astype(jnp.bfloat16)

    # Online-softmax (flash) update for this KV tile.
    s = jnp.einsum('hqd,hkd->hqk', q_scr[...], kh,
                   preferred_element_type=jnp.float32)            # (NH, S, TK)
    m_new = jnp.maximum(m_scr[...], s.max(-1, keepdims=True))
    alpha = jnp.exp(m_scr[...] - m_new)
    p = jnp.exp(s - m_new)
    l_scr[...] = alpha * l_scr[...] + p.sum(-1, keepdims=True)
    acc_scr[...] = alpha * acc_scr[...] + jnp.einsum(
        'hqk,hkd->hqd', p.astype(jnp.bfloat16), vh,
        preferred_element_type=jnp.float32)
    m_scr[...] = m_new

    @pl.when(kv == nkv - 1)
    def _():
        o = acc_scr[...] * pl.reciprocal(l_scr[...], approx=True)  # (NH, S, HD)
        # head concat (torch layout: feature = h*HD + d) then ONE folded matmul
        o_cat = jnp.transpose(o, (1, 0, 2)).reshape(seq, num_heads * head_dim)
        out = jnp.dot(o_cat.astype(jnp.bfloat16), wo_ref[...],
                      preferred_element_type=jnp.float32) + bo_ref[...]
        out_ref[0] = out.astype(out_ref.dtype)


# -----------------------------------------------------------------------------
# Wrapper
# -----------------------------------------------------------------------------
def liquid_content_generator(context, pattern_embedding, params):
    """context: (B,S,H) f32; pattern_embedding: (64,) or (1,64) f32."""
    if pattern_embedding.ndim == 1:
        pattern_embedding = pattern_embedding[None, :]
    B, S, H = context.shape
    L = params['w_sum_t'].shape[0]
    assert H % NUM_HEADS == 0, "hidden size must be divisible by 8 heads"
    HD = H // NUM_HEADS
    vmem_limit = _vmem_limit_bytes()

    # ---- loop-invariant precompute (outside the kernels) ----
    patc = jnp.einsum('k,lkh->lh', pattern_embedding[0], params['w_pat_t'])
    bias_comb = (params['b_sum'] + params['b_pat'] + patc).reshape(L, 1, H)
    decay = jnp.exp(-DT / (params['tau'] + 1e-6)).reshape(L, 1, H)
    omd = 1.0 - decay

    # ---------------- kernel 1: liquid layers over flattened rows ------------
    R = B * S
    Rt = _pick_tile(R, ROW_TILE_TARGET)
    ctx_rows = context.reshape(R, H)

    state_rows = pl.pallas_call(
        liquid_layers_kernel,
        out_shape=jax.ShapeDtypeStruct((R, H), jnp.float32),
        grid_spec=pltpu.PrefetchScalarGridSpec(
            num_scalar_prefetch=0,
            grid=(R // Rt, L),
            in_specs=[
                pl.BlockSpec((Rt, H), lambda r, l: (r, 0)),        # context rows
                pl.BlockSpec((1, H, H), lambda r, l: (l, 0, 0)),   # W_sum streamed per layer
                pl.BlockSpec((1, 1, H), lambda r, l: (l, 0, 0)),   # folded bias
                pl.BlockSpec((1, 1, H), lambda r, l: (l, 0, 0)),   # decay
                pl.BlockSpec((1, 1, H), lambda r, l: (l, 0, 0)),   # 1 - decay
            ],
            out_specs=pl.BlockSpec((Rt, H), lambda r, l: (r, 0))), # state accumulator
        compiler_params=pltpu.CompilerParams(
            dimension_semantics=("parallel", "arbitrary"),
            vmem_limit_bytes=vmem_limit),
    )(ctx_rows, params['w_sum_t'], bias_comb, decay, omd)

    liquid_state = state_rows.reshape(B, S, H)

    # ---------------- kernel 2: attention + folded output projection ---------
    TK = _pick_tile(S, KV_TILE_TARGET)
    out = pl.pallas_call(
        attention_kernel,
        out_shape=jax.ShapeDtypeStruct((B, S, H), jnp.float32),
        grid_spec=pltpu.PrefetchScalarGridSpec(
            num_scalar_prefetch=0,
            grid=(B, S // TK),
            in_specs=[
                pl.BlockSpec((1, S, H), lambda b, kv: (b, 0, 0)),   # full seq (Q)
                pl.BlockSpec((1, TK, H), lambda b, kv: (b, kv, 0)), # KV tile
                pl.BlockSpec((H, H), lambda b, kv: (0, 0)),         # Wq^T
                pl.BlockSpec((1, H), lambda b, kv: (0, 0)),         # bq
                pl.BlockSpec((H, 2 * H), lambda b, kv: (0, 0)),     # [Wk^T|Wv^T]
                pl.BlockSpec((1, H), lambda b, kv: (0, 0)),         # bv
                pl.BlockSpec((H, H), lambda b, kv: (0, 0)),         # folded out/final weight
                pl.BlockSpec((1, H), lambda b, kv: (0, 0)),         # folded out/final bias
            ],
            out_specs=pl.BlockSpec((1, S, H), lambda b, kv: (b, 0, 0)),
            scratch_shapes=[
                pltpu.VMEM((NUM_HEADS, S, HD), jnp.bfloat16),  # Q (scaled)
                pltpu.VMEM((NUM_HEADS, S, 1), jnp.float32),    # running max
                pltpu.VMEM((NUM_HEADS, S, 1), jnp.float32),    # running denom
                pltpu.VMEM((NUM_HEADS, S, HD), jnp.float32),   # output accumulator
            ]),
        compiler_params=pltpu.CompilerParams(
            dimension_semantics=("parallel", "arbitrary"),
            vmem_limit_bytes=vmem_limit),
    )(liquid_state, liquid_state,
      params['w_q_t'], params['b_q'], params['w_kv_t'], params['b_v'],
      params['w_of_t'], params['b_of'])
    return out


# -----------------------------------------------------------------------------
# Deterministic synthetic parameters (torch Linear layout is (out,in); we
# pre-transpose / pre-fold so the kernels compute y = x @ W^T + b with bf16
# MXU inputs and f32 accumulation).
# -----------------------------------------------------------------------------
def make_params(key, hidden, layers):
    assert hidden % NUM_HEADS == 0
    ks = list(jax.random.split(key, 12))

    def lin_w(k, out_d, in_d, lead=None):
        bound = 1.0 / math.sqrt(in_d)
        shape = (out_d, in_d) if lead is None else (lead, out_d, in_d)
        return jax.random.uniform(k, shape, jnp.float32, -bound, bound)

    def lin_b(k, out_d, in_d, lead=None):
        bound = 1.0 / math.sqrt(in_d)
        shape = (out_d,) if lead is None else (lead, out_d)
        return jax.random.uniform(k, shape, jnp.float32, -bound, bound)

    w_in = lin_w(ks[0], hidden, hidden, layers)              # (L, H, H)
    w_rec = lin_w(ks[1], hidden, hidden, layers)
    w_pat = lin_w(ks[2], hidden, PATTERN_DIM, layers)        # (L, H, 64)
    b_in = lin_b(ks[3], hidden, hidden, layers)              # (L, H)
    b_rec = lin_b(ks[4], hidden, hidden, layers)
    b_pat = lin_b(ks[5], hidden, PATTERN_DIM, layers)
    tau = jnp.ones((layers, hidden), jnp.float32)            # nn.Parameter(torch.ones(H))

    in_proj_w = lin_w(ks[6], 3 * hidden, hidden)             # (3H, H)
    in_proj_b = lin_b(ks[7], 3 * hidden, hidden)             # (3H,)
    out_proj_w = lin_w(ks[8], hidden, hidden)
    out_proj_b = lin_b(ks[9], hidden, hidden)
    final_w = lin_w(ks[10], hidden, hidden)
    final_b = lin_b(ks[11], hidden, hidden)

    # fold W_in + W_rec (same input x) into one per-layer weight / bias
    w_sum_t = (jnp.swapaxes(w_in, -1, -2)
               + jnp.swapaxes(w_rec, -1, -2)).astype(jnp.bfloat16)   # (L, H, H)
    b_sum = b_in + b_rec                                             # (L, H)

    # attention projections: Q separate (projected once per batch),
    # K/V fused lane-dense (H, 2H); key bias dropped (cancels in softmax).
    in_proj_w_t = in_proj_w.T                                        # (H, 3H)
    w_q_t = in_proj_w_t[:, :hidden].astype(jnp.bfloat16)             # (H, H)
    w_kv_t = in_proj_w_t[:, hidden:].astype(jnp.bfloat16)            # (H, 2H)
    b_q = in_proj_b[:hidden][None, :]                                # (1, H)
    b_v = in_proj_b[2 * hidden:3 * hidden][None, :]                  # (1, H)

    # fold MHA out_proj with the module's output_projection into one matmul
    w_of = out_proj_w.T @ final_w.T                                  # (H, H)
    b_of = out_proj_b @ final_w.T + final_b                          # (H,)

    return {
        'w_sum_t': w_sum_t,                                 # (L, H, H) bf16
        'b_sum': b_sum,                                     # (L, H)    f32
        'w_pat_t': jnp.swapaxes(w_pat, -1, -2),             # (L, 64, H) f32
        'b_pat': b_pat,                                     # (L, H)
        'tau': tau,                                         # (L, H)
        'w_q_t': w_q_t,                                     # (H, H)  bf16
        'b_q': b_q,                                         # (1, H)  f32
        'w_kv_t': w_kv_t,                                   # (H, 2H) bf16
        'b_v': b_v,                                         # (1, H)  f32
        'w_of_t': w_of.astype(jnp.bfloat16),                # (H, H)  bf16
        'b_of': b_of[None, :],                              # (1, H)  f32
    }


if __name__ == "__main__":
    # Small config consistent with the module: hidden divisible by 8 heads.
    # TODO(synk): for real deployments use H a multiple of 128 (lane-dense
    # outputs, unpadded head_dim); this demo shape is intentionally tiny.
    B, S, H, L = 2, 8, 32, 2

    key = jax.random.PRNGKey(0)
    k_ctx, k_pat, k_par = jax.random.split(key, 3)

    context = jax.random.normal(k_ctx, (B, S, H), jnp.float32)
    pattern_embedding = jax.random.normal(k_pat, (PATTERN_DIM,), jnp.float32)
    params = make_params(k_par, H, L)

    # TODO(synk): adaptation_context (a Python dict) is unused in the reference
    # forward-pass math, so it is not represented in the kernel.
    out = liquid_content_generator(context, pattern_embedding, params)
    jax.block_until_ready(out)
    assert out.shape == (B, S, H) and out.dtype == jnp.float32
    print("KERNEL_OK")
</pallas_src>

<mosaic_0001>
module attributes {stable_mosaic.version = 11 : i64} {
  func.func @liquid_layers_kernel(%arg0: i32, %arg1: i32, %arg2: memref<16x32xf32, #tpu.memory_space<vmem>>, %arg3: memref<1x32x32xbf16, #tpu.memory_space<vmem>>, %arg4: memref<1x1x32xf32, #tpu.memory_space<vmem>>, %arg5: memref<1x1x32xf32, #tpu.memory_space<vmem>>, %arg6: memref<1x1x32xf32, #tpu.memory_space<vmem>>, %arg7: memref<16x32xf32, #tpu.memory_space<vmem>>) attributes {dimension_semantics = [#tpu.dimension_semantics<parallel>, #tpu.dimension_semantics<arbitrary>], iteration_bounds = array<i64: 1, 2>, scalar_prefetch = 0 : i64, scratch_operands = 0 : i64, tpu.core_type = #tpu.core_type<tc>, window_params = [{transform_indices = @transform_0, window_bounds = array<i64: 16, 32>}, {transform_indices = @transform_1, window_bounds = array<i64: 1, 32, 32>}, {transform_indices = @transform_2, window_bounds = array<i64: 1, 1, 32>}, {transform_indices = @transform_3, window_bounds = array<i64: 1, 1, 32>}, {transform_indices = @transform_4, window_bounds = array<i64: 1, 1, 32>}, {transform_indices = @transform_5, window_bounds = array<i64: 16, 32>}]} {
    %c0_i32 = arith.constant 0 : i32
    %0 = arith.cmpi eq, %arg1, %c0_i32 : i32
    %1 = arith.extui %0 : i1 to i32
    %c0_i32_0 = arith.constant 0 : i32
    %2 = arith.cmpi ne, %1, %c0_i32_0 : i32
    scf.if %2 {
      %c0_16 = arith.constant 0 : index
      %c0_17 = arith.constant 0 : index
      %23 = vector.load %arg2[%c0_16, %c0_17] : memref<16x32xf32, #tpu.memory_space<vmem>>, vector<16x32xf32>
      %c0_18 = arith.constant 0 : index
      %c0_19 = arith.constant 0 : index
      %24 = vector.load %arg7[%c0_18, %c0_19] : memref<16x32xf32, #tpu.memory_space<vmem>>, vector<16x32xf32>
      tpu.vector_store %arg7[%c0_18, %c0_19], %23 {strides = array<i32>} : memref<16x32xf32, #tpu.memory_space<vmem>>, vector<16x32xf32>,
    } else {
    }
    %c0 = arith.constant 0 : index
    %c0_1 = arith.constant 0 : index
    %3 = vector.load %arg7[%c0, %c0_1] : memref<16x32xf32, #tpu.memory_space<vmem>>, vector<16x32xf32>
    %4 = arith.truncf %3 : vector<16x32xf32> to vector<16x32xbf16>
    %c0_2 = arith.constant 0 : index
    %c0_3 = arith.constant 0 : index
    %c0_4 = arith.constant 0 : index
    %5 = vector.load %arg3[%c0_2, %c0_3, %c0_4] : memref<1x32x32xbf16, #tpu.memory_space<vmem>>, vector<1x32x32xbf16>
    %6 = vector.shape_cast %5 : vector<1x32x32xbf16> to vector<32x32xbf16>
    %cst = arith.constant dense<0.000000e+00> : vector<16x32xf32>
    %7 = tpu.matmul %4, %6, %cst {dimension_numbers = #tpu.dot_dimension_numbers<[1], [0], [0], [1], [0, 0, 1, 1], [], []>} : vector<16x32xbf16>, vector<32x32xbf16>, vector<16x32xf32> -> vector<16x32xf32>
    %c0_5 = arith.constant 0 : index
    %c0_6 = arith.constant 0 : index
    %c0_7 = arith.constant 0 : index
    %8 = vector.load %arg4[%c0_5, %c0_6, %c0_7] : memref<1x1x32xf32, #tpu.memory_space<vmem>>, vector<1x1x32xf32>
    %9 = vector.shape_cast %8 : vector<1x1x32xf32> to vector<1x32xf32>
    %10 = vector.broadcast %9 : vector<1x32xf32> to vector<16x32xf32>
    %11 = arith.addf %7, %10 : vector<16x32xf32>
    %c0_8 = arith.constant 0 : index
    %c0_9 = arith.constant 0 : index
    %c0_10 = arith.constant 0 : index
    %12 = vector.load %arg5[%c0_8, %c0_9, %c0_10] : memref<1x1x32xf32, #tpu.memory_space<vmem>>, vector<1x1x32xf32>
    %13 = vector.shape_cast %12 : vector<1x1x32xf32> to vector<1x32xf32>
    %14 = vector.broadcast %13 : vector<1x32xf32> to vector<16x32xf32>
    %15 = arith.mulf %14, %3 : vector<16x32xf32>
    %c0_11 = arith.constant 0 : index
    %c0_12 = arith.constant 0 : index
    %c0_13 = arith.constant 0 : index
    %16 = vector.load %arg6[%c0_11, %c0_12, %c0_13] : memref<1x1x32xf32, #tpu.memory_space<vmem>>, vector<1x1x32xf32>
    %17 = vector.shape_cast %16 : vector<1x1x32xf32> to vector<1x32xf32>
    %18 = math.tanh %11 : vector<16x32xf32>
    %19 = vector.broadcast %17 : vector<1x32xf32> to vector<16x32xf32>
    %20 = arith.mulf %19, %18 : vector<16x32xf32>
    %21 = arith.addf %15, %20 : vector<16x32xf32>
    %c0_14 = arith.constant 0 : index
    %c0_15 = arith.constant 0 : index
    %22 = vector.load %arg7[%c0_14, %c0_15] : memref<16x32xf32, #tpu.memory_space<vmem>>, vector<16x32xf32>
    tpu.vector_store %arg7[%c0_14, %c0_15], %21 {strides = array<i32>} : memref<16x32xf32, #tpu.memory_space<vmem>>, vector<16x32xf32>,
    return
  }
  func.func @transform_0(%arg0: i32, %arg1: i32) -> (i32, i32) {
    %c0_i32 = arith.constant 0 : i32
    %c0_i32_0 = arith.constant 0 : i32
    return %arg0, %c0_i32 : i32, i32
  }
  func.func @transform_1(%arg0: i32, %arg1: i32) -> (i32, i32, i32) {
    %c0_i32 = arith.constant 0 : i32
    %c0_i32_0 = arith.constant 0 : i32
    %c0_i32_1 = arith.constant 0 : i32
    return %arg1, %c0_i32, %c0_i32_0 : i32, i32, i32
  }
  func.func @transform_2(%arg0: i32, %arg1: i32) -> (i32, i32, i32) {
    %c0_i32 = arith.constant 0 : i32
    %c0_i32_0 = arith.constant 0 : i32
    %c0_i32_1 = arith.constant 0 : i32
    return %arg1, %c0_i32, %c0_i32_0 : i32, i32, i32
  }
  func.func @transform_3(%arg0: i32, %arg1: i32) -> (i32, i32, i32) {
    %c0_i32 = arith.constant 0 : i32
    %c0_i32_0 = arith.constant 0 : i32
    %c0_i32_1 = arith.constant 0 : i32
    return %arg1, %c0_i32, %c0_i32_0 : i32, i32, i32
  }
  func.func @transform_4(%arg0: i32, %arg1: i32) -> (i32, i32, i32) {
    %c0_i32 = arith.constant 0 : i32
    %c0_i32_0 = arith.constant 0 : i32
    %c0_i32_1 = arith.constant 0 : i32
    return %arg1, %c0_i32, %c0_i32_0 : i32, i32, i32
  }
  func.func @transform_5(%arg0: i32, %arg1: i32) -> (i32, i32) {
    %c0_i32 = arith.constant 0 : i32
    %c0_i32_0 = arith.constant 0 : i32
    return %arg0, %c0_i32 : i32, i32
  }
}

</mosaic_0001>

<llo_original>
// kernel: tpu_custom_call.1
$region0: #{tpu_custom_call.1}
  #allocation0 [shape = 'u32[]', space=smem, size = 0x4, offset = 0x4, fixed_abs, tag = 'smem constant byte address 0x4 - core index']
  #allocation1 [shape = 'u32[72,128]{1,0:T(1,128)}', space=vmem, size = 0x9000, scoped, tag = 'internal scratch']
  %s0 = inlined_call_operand.hbm [shape: f32[16,32], index: 0, kind: input, shape index: {}]
  %s1 = inlined_call_operand.hbm [shape: bf16[2,32,32], index: 1, kind: input, shape index: {}]
  %s2 = inlined_call_operand.hbm [shape: f32[2,1,32], index: 2, kind: input, shape index: {}]
  %s3 = inlined_call_operand.vmem [shape: f32[2,1,32], index: 3, kind: input, shape index: {}]
  %s4 = inlined_call_operand.hbm [shape: f32[2,1,32], index: 4, kind: input, shape index: {}]
  %s5 = inlined_call_operand.hbm [shape: f32[16,32], index: 5, kind: output, shape index: {}]
  %s6 = sld [smem:[#allocation0]]
  $region73: #{tpu_custom_call.1} parent=0
    _
  %s8 = ssub.s32 1, %s6
  %s9 = scalar_select 0, %s8, %s6
  $region1: #{tpu_custom_call.1} parent=0
    #allocation2 [shape = 'u8[8192]{0}', space=vmem, size = 0x2000, scoped, tag = 'input window, operand 0, single buffered']
    #allocation3 [shape = 's32[2]{0}', space=sflag, size = 0x8, scoped, tag = 'scoped memory for tpu_custom_call.1']
    #allocation4 [shape = 's32[2]{0}', space=sflag, size = 0x8, scoped, tag = 'scoped memory for tpu_custom_call.1']
    #allocation5 [shape = 'u8[16384]{0}', space=vmem, size = 0x4000, scoped, tag = 'input window, operand 1']
    #allocation6 [shape = 's32[2]{0}', space=sflag, size = 0x8, scoped, tag = 'scoped memory for tpu_custom_call.1']
    #allocation7 [shape = 'u8[1024]{0}', space=vmem, size = 0x400, scoped, tag = 'input window, operand 2']
    #allocation8 [shape = 'u8[1024]{0}', space=vmem, size = 0x400, scoped, tag = 'input window, operand 4']
    #allocation9 [shape = 's32[2]{0}', space=sflag, size = 0x8, scoped, tag = 'scoped memory for tpu_custom_call.1']
    #allocation10 [shape = 'u8[8192]{0}', space=vmem, size = 0x2000, scoped, tag = 'output window, operand 0, single buffered']
    %10 = vsyncpa [#allocation3], 0
    %11 = vsyncpa [#allocation6], 0
    %s12 = scalar_lea.sflag [#allocation6], 1
    %13 = vsyncpa %s12, 0
    %14 = vsyncpa [#allocation9], 0
    %s15 = scalar_lea.sflag [#allocation9], 1
    %16 = vsyncpa %s15, 0
    %17 = vsyncpa [#allocation4], 0
    loop: start=0, step=1, limit=4
    $region2: #{tpu_custom_call.1} parent=1 // loop_pre_header
      _
    $region3: #{tpu_custom_call.1} parent=1 // loop_header
      %s19 = sphi 0, %s23
      %p20 = scmp.ge.s32.totalorder %s19, 4
      %s26 = sphi 0, %s38
      %s27 = sphi 0, %s34
      %s28 = sphi 0, %s26
      %s29 = sphi 0, %s27
      %s30 = sphi 0, %s28
      %s31 = sphi 0, %s29
      %s41 = sphi 0, %s43
      %s44 = sphi 0, %s41
      %s45 = sphi 0, %s44
      %s61 = sphi 0, %s45
      %s67 = sphi 0, %s69
      %s70 = sphi 0, %s67
      %s71 = sphi 0, %s70
      %s87 = sphi 0, %s71
      %s93 = sphi 0, %s95
      %s96 = sphi 0, %s93
      %s97 = sphi 0, %s96
      %s113 = sphi 0, %s97
      %s119 = sphi 0, %s121
      %s122 = sphi 0, %s119
      %s123 = sphi 0, %s122
      %s139 = sphi 0, %s123
      %s145 = sphi 0, %s147
      %s148 = sphi 0, %s145
      %s149 = sphi 0, %s148
      %s165 = sphi 0, %s149
      %s171 = sphi 0, %s173
      %s174 = sphi 0, %s171
      %s175 = sphi 0, %s174
      %s191 = sphi 0, %s175
    $region4: #{tpu_custom_call.1} parent=1 // loop_header_branch
      %22 = sbr.rel (%p20) target = $region8
    $region5: #{tpu_custom_call.1} parent=1 // loop_body
      %s24 = ssub.s32 %s19, 1
      %s25 = ssub.s32 %s19, 2
      %s32 = sadd.s32 1, %s27
      %p33 = scmp.ge.s32.totalorder %s32, 2
      %s34 = scalar_select %p33, 0, %s32
      %s35 = sadd.s32 1, %s26
      %s36 = scalar_select %p33, %s35, %s26
      %p37 = scmp.ge.s32.totalorder %s36, 1
      %s38 = scalar_select %p37, 0, %s36
      %s39 = ssub.s32 %s26, %s38
      %p40 = scmp.eq.s32.totalorder %s39, 0
      %s42 = sadd.s32 %s41, 1
      %s43 = scalar_select %p40, %s41, %s42
      %p46 = pneg %p40
      %p47 = scmp.eq.s32.totalorder %s19, 1
      %p48 = por %p46, %p47
      %p49 = scmp.ne.s32.totalorder %s41, %s44
      %p50 = scmp.eq.s32.totalorder %s19, 0
      %p51 = por %p49, %p50
      %p52 = scmp.ne.s32.totalorder %s41, %s44
      %p53 = scmp.eq.s32.totalorder %s24, 1
      %p54 = por %p52, %p53
      %p55 = scmp.ne.s32.totalorder %s44, %s45
      %p56 = scmp.eq.s32.totalorder %s24, 0
      %p57 = por %p55, %p56
      %p58 = scmp.ne.s32.totalorder %s44, %s45
      %p59 = scmp.eq.s32.totalorder %s25, 1
      %p60 = por %p58, %p59
      %p62 = scmp.ne.s32.totalorder %s45, %s61
      %p63 = scmp.eq.s32.totalorder %s25, 0
      %p64 = por %p62, %p63
      %s65 = ssub.s32 %s27, %s34
      %p66 = scmp.eq.s32.totalorder %s65, 0
      %s68 = sadd.s32 %s67, 1
      %s69 = scalar_select %p66, %s67, %s68
      %p72 = pneg %p66
      %p73 = scmp.eq.s32.totalorder %s19, 1
      %p74 = por %p72, %p73
      %p75 = scmp.ne.s32.totalorder %s67, %s70
      %p76 = scmp.eq.s32.totalorder %s19, 0
      %p77 = por %p75, %p76
      %p78 = scmp.ne.s32.totalorder %s67, %s70
      %p79 = scmp.eq.s32.totalorder %s24, 1
      %p80 = por %p78, %p79
      %p81 = scmp.ne.s32.totalorder %s70, %s71
      %p82 = scmp.eq.s32.totalorder %s24, 0
      %p83 = por %p81, %p82
      %p84 = scmp.ne.s32.totalorder %s70, %s71
      %p85 = scmp.eq.s32.totalorder %s25, 1
      %p86 = por %p84, %p85
      %p88 = scmp.ne.s32.totalorder %s71, %s87
      %p89 = scmp.eq.s32.totalorder %s25, 0
      %p90 = por %p88, %p89
      %s91 = ssub.s32 %s27, %s34
      %p92 = scmp.eq.s32.totalorder %s91, 0
      %s94 = sadd.s32 %s93, 1
      %s95 = scalar_select %p92, %s93, %s94
      %p98 = pneg %p92
      %p99 = scmp.eq.s32.totalorder %s19, 1
      %p100 = por %p98, %p99
      %p101 = scmp.ne.s32.totalorder %s93, %s96
      %p102 = scmp.eq.s32.totalorder %s19, 0
      %p103 = por %p101, %p102
      %p104 = scmp.ne.s32.totalorder %s93, %s96
      %p105 = scmp.eq.s32.totalorder %s24, 1
      %p106 = por %p104, %p105
      %p107 = scmp.ne.s32.totalorder %s96, %s97
      %p108 = scmp.eq.s32.totalorder %s24, 0
      %p109 = por %p107, %p108
      %p110 = scmp.ne.s32.totalorder %s96, %s97
      %p111 = scmp.eq.s32.totalorder %s25, 1
      %p112 = por %p110, %p111
      %p114 = scmp.ne.s32.totalorder %s97, %s113
      %p115 = scmp.eq.s32.totalorder %s25, 0
      %p116 = por %p114, %p115
      %s117 = ssub.s32 %s27, %s34
      %p118 = scmp.eq.s32.totalorder %s117, 0
      %s120 = sadd.s32 %s119, 1
      %s121 = scalar_select %p118, %s119, %s120
      %p124 = pneg %p118
      %p125 = scmp.eq.s32.totalorder %s19, 1
      %p126 = por %p124, %p125
      %p127 = scmp.ne.s32.totalorder %s119, %s122
      %p128 = scmp.eq.s32.totalorder %s19, 0
      %p129 = por %p127, %p128
      %p130 = scmp.ne.s32.totalorder %s119, %s122
      %p131 = scmp.eq.s32.totalorder %s24, 1
      %p132 = por %p130, %p131
      %p133 = scmp.ne.s32.totalorder %s122, %s123
      %p134 = scmp.eq.s32.totalorder %s24, 0
      %p135 = por %p133, %p134
      %p136 = scmp.ne.s32.totalorder %s122, %s123
      %p137 = scmp.eq.s32.totalorder %s25, 1
      %p138 = por %p136, %p137
      %p140 = scmp.ne.s32.totalorder %s123, %s139
      %p141 = scmp.eq.s32.totalorder %s25, 0
      %p142 = por %p140, %p141
      %s143 = ssub.s32 %s27, %s34
      %p144 = scmp.eq.s32.totalorder %s143, 0
      %s146 = sadd.s32 %s145, 1
      %s147 = scalar_select %p144, %s145, %s146
      %p150 = pneg %p144
      %p151 = scmp.eq.s32.totalorder %s19, 1
      %p152 = por %p150, %p151
      %p153 = scmp.ne.s32.totalorder %s145, %s148
      %p154 = scmp.eq.s32.totalorder %s19, 0
      %p155 = por %p153, %p154
      %p156 = scmp.ne.s32.totalorder %s145, %s148
      %p157 = scmp.eq.s32.totalorder %s24, 1
      %p158 = por %p156, %p157
      %p159 = scmp.ne.s32.totalorder %s148, %s149
      %p160 = scmp.eq.s32.totalorder %s24, 0
      %p161 = por %p159, %p160
      %p162 = scmp.ne.s32.totalorder %s148, %s149
      %p163 = scmp.eq.s32.totalorder %s25, 1
      %p164 = por %p162, %p163
      %p166 = scmp.ne.s32.totalorder %s149, %s165
      %p167 = scmp.eq.s32.totalorder %s25, 0
      %p168 = por %p166, %p167
      %s169 = ssub.s32 %s26, %s38
      %p170 = scmp.eq.s32.totalorder %s169, 0
      %s172 = sadd.s32 %s171, 1
      %s173 = scalar_select %p170, %s171, %s172
      %p176 = pneg %p170
      %p177 = scmp.eq.s32.totalorder %s19, 1
      %p178 = por %p176, %p177
      %p179 = scmp.ne.s32.totalorder %s171, %s174
      %p180 = scmp.eq.s32.totalorder %s19, 0
      %p181 = por %p179, %p180
      %p182 = scmp.ne.s32.totalorder %s171, %s174
      %p183 = scmp.eq.s32.totalorder %s24, 1
      %p184 = por %p182, %p183
      %p185 = scmp.ne.s32.totalorder %s174, %s175
      %p186 = scmp.eq.s32.totalorder %s24, 0
      %p187 = por %p185, %p186
      %p188 = scmp.ne.s32.totalorder %s174, %s175
      %p189 = scmp.eq.s32.totalorder %s25, 1
      %p190 = por %p188, %p189
      %p192 = scmp.ne.s32.totalorder %s175, %s191
      %p193 = scmp.eq.s32.totalorder %s25, 0
      %p194 = por %p192, %p193
      %p195 = scmp.le.s32.totalorder 1, %s19
      %p196 = scmp.lt.s32.totalorder %s19, 3
      %p197 = pnand %p195, %p196
      %p198 = pneg %p197
      // Predicated region
      $region9: #{tpu_custom_call.1} parent=5 // pred_check
        _
      $region10: #{tpu_custom_call.1} parent=5 // pred_check_branch
        %200 = sbr.rel (%p197) target = $region12
      $region11: #{tpu_custom_call.1} parent=5 // pred_region
        %s201 = ssub.s32 %s19, 1
        // Predicated region
        $region13: #{tpu_custom_call.1} parent=11 // pred_check
          %p202 = pneg %p57
        $region14: #{tpu_custom_call.1} parent=11 // pred_check_branch
          %204 = sbr.rel (%p202) target = $region16
        $region15: #{tpu_custom_call.1} parent=11 // pred_region
          %s205 = smul.u32 2, %s28
          %207 = vsyncadd [#allocation3], 0
          %s208 = smul.addr %s205, 8
          %s209 = scalar_lea.hbm %s0, %s208
          %s210 = sshll.u32 %s209, 4
          %s211 = int_to_ptr.hbm [resolvable:$true] %s210
          %s212 = sshll.u32 [#allocation2], 4
          %s213 = int_to_ptr.vmem [resolvable:$true] %s212
          %218 = dma.hbm_to_vmem [thread:$0]  %s211, 256, %s213, [#allocation3], 128, 128, 8
        $region16: #{tpu_custom_call.1} parent=11 // pred_fallthru
          _
      $region12: #{tpu_custom_call.1} parent=5 // pred_fallthru
        _
      %p219 = scmp.lt.s32.totalorder %s19, 2
      // Predicated region
      $region17: #{tpu_custom_call.1} parent=5 // pred_check
        %p220 = pneg %p219
      $region18: #{tpu_custom_call.1} parent=5 // pred_check_branch
        %222 = sbr.rel (%p220) target = $region20
      $region19: #{tpu_custom_call.1} parent=5 // pred_region
        // Predicated region
        $region21: #{tpu_custom_call.1} parent=19 // pred_check
          %p223 = pneg %p77
        $region22: #{tpu_custom_call.1} parent=19 // pred_check_branch
          %225 = sbr.rel (%p223) target = $region24
        $region23: #{tpu_custom_call.1} parent=19 // pred_region
          %s226 = sand.u32 %s19, 1
          %s227 = scalar_lea.sflag [#allocation6], %s226
          %s228 = sand.u32 %s67, 1
          %s229 = smul.addr %s228, 16
          %s230 = scalar_lea.vmem [#allocation5], %s229
          %232 = vsyncadd %s227, 0
          %s233 = smul.addr %s27, 4
          %s234 = smul.addr %s233, 4
          %s235 = scalar_lea.hbm %s1, %s234
          %s236 = sshll.u32 %s235, 4
          %s237 = int_to_ptr.hbm [resolvable:$true] %s236
          %s238 = sshll.u32 %s230, 4
          %s239 = int_to_ptr.vmem [resolvable:$true] %s238
          %244 = dma.hbm_to_vmem [thread:$0]  %s237, 256, %s239, %s227, 64, 64, 4
        $region24: #{tpu_custom_call.1} parent=19 // pred_fallthru
          _
        // Predicated region
        $region25: #{tpu_custom_call.1} parent=19 // pred_check
          %p245 = pneg %p103
        $region26: #{tpu_custom_call.1} parent=19 // pred_check_branch
          %247 = sbr.rel (%p245) target = $region28
        $region27: #{tpu_custom_call.1} parent=19 // pred_region
          %s248 = sand.u32 %s19, 1
          %s249 = scalar_lea.sflag [#allocation6], %s248
          %s250 = sand.u32 %s93, 1
          %s251 = scalar_lea.vmem [#allocation7], %s250
          %253 = vsyncadd %s249, 0
          %s254 = scalar_lea.hbm %s2, %s27
          %s256 = sshll.u32 %s254, 4
          %s257 = int_to_ptr.hbm [resolvable:$true] %s256
          %s258 = sshll.u32 %s251, 4
          %s259 = int_to_ptr.vmem [resolvable:$true] %s258
          %261 = dma.hbm_to_vmem [thread:$0]  %s257, 16, %s259, %s249
        $region28: #{tpu_custom_call.1} parent=19 // pred_fallthru
          _
        // Predicated region
        $region29: #{tpu_custom_call.1} parent=19 // pred_check
          %p262 = pneg %p129
        $region30: #{tpu_custom_call.1} parent=19 // pred_check_branch
          %264 = sbr.rel (%p262) target = $region32
        $region31: #{tpu_custom_call.1} parent=19 // pred_region
          %p265 = scmp.lt.s32.totalorder %s27, 1
          %s266 = scalar_select %p265, %s27, 1
          %s267 = scalar_lea.vmem %s3, %s266
        $region32: #{tpu_custom_call.1} parent=19 // pred_fallthru
          _
        // Predicated region
        $region33: #{tpu_custom_call.1} parent=19 // pred_check
          %p268 = pneg %p155
        $region34: #{tpu_custom_call.1} parent=19 // pred_check_branch
          %270 = sbr.rel (%p268) target = $region36
        $region35: #{tpu_custom_call.1} parent=19 // pred_region
          %s271 = sand.u32 %s145, 1
          %s272 = scalar_lea.sflag [#allocation9], %s271
          %s273 = sand.u32 %s145, 1
          %s274 = scalar_lea.vmem [#allocation8], %s273
          %276 = vsyncadd %s272, 0
          %s277 = scalar_lea.hbm %s4, %s27
          %s279 = sshll.u32 %s277, 4
          %s280 = int_to_ptr.hbm [resolvable:$true] %s279
          %s281 = sshll.u32 %s274, 4
          %s282 = int_to_ptr.vmem [resolvable:$true] %s281
          %284 = dma.hbm_to_vmem [thread:$0]  %s280, 16, %s282, %s272
        $region36: #{tpu_custom_call.1} parent=19 // pred_fallthru
          _
      $region20: #{tpu_custom_call.1} parent=5 // pred_fallthru
        _
      %p285 = scmp.le.s32.totalorder 1, %s19
      %p286 = scmp.lt.s32.totalorder %s19, 3
      %p287 = pnand %p285, %p286
      %p288 = pneg %p287
      // Predicated region
      $region37: #{tpu_custom_call.1} parent=5 // pred_check
        _
      $region38: #{tpu_custom_call.1} parent=5 // pred_check_branch
        %290 = sbr.rel (%p287) target = $region40
      $region39: #{tpu_custom_call.1} parent=5 // pred_region
        %s291 = ssub.s32 %s19, 1
        // Predicated region
        $region41: #{tpu_custom_call.1} parent=39 // pred_check
          %p292 = pneg %p57
        $region42: #{tpu_custom_call.1} parent=39 // pred_check_branch
          %294 = sbr.rel (%p292) target = $region44
        $region43: #{tpu_custom_call.1} parent=39 // pred_region
          %296 = dma.done [#allocation3], 256
        $region44: #{tpu_custom_call.1} parent=39 // pred_fallthru
          _
        %s297 = sand.u32 %s24, 1
        %s298 = scalar_lea.sflag [#allocation6], %s297
        %s299 = sand.u32 %s70, 1
        %s300 = smul.addr %s299, 16
        %s301 = scalar_lea.vmem [#allocation5], %s300
        // Predicated region
        $region45: #{tpu_custom_call.1} parent=39 // pred_check
          %p302 = pneg %p83
        $region46: #{tpu_custom_call.1} parent=39 // pred_check_branch
          %304 = sbr.rel (%p302) target = $region48
        $region47: #{tpu_custom_call.1} parent=39 // pred_region
          %306 = dma.done %s298, 256
        $region48: #{tpu_custom_call.1} parent=39 // pred_fallthru
          _
        %s307 = sand.u32 %s24, 1
        %s308 = scalar_lea.sflag [#allocation6], %s307
        %s309 = sand.u32 %s96, 1
        %s310 = scalar_lea.vmem [#allocation7], %s309
        // Predicated region
        $region49: #{tpu_custom_call.1} parent=39 // pred_check
          %p311 = pneg %p109
        $region50: #{tpu_custom_call.1} parent=39 // pred_check_branch
          %313 = sbr.rel (%p311) target = $region52
        $region51: #{tpu_custom_call.1} parent=39 // pred_region
          %315 = dma.done %s308, 16
        $region52: #{tpu_custom_call.1} parent=39 // pred_fallthru
          _
        %s316 = sand.u32 %s148, 1
        %s317 = scalar_lea.sflag [#allocation9], %s316
        %s318 = sand.u32 %s148, 1
        %s319 = scalar_lea.vmem [#allocation8], %s318
        // Predicated region
        $region53: #{tpu_custom_call.1} parent=39 // pred_check
          %p320 = pneg %p161
        $region54: #{tpu_custom_call.1} parent=39 // pred_check_branch
          %322 = sbr.rel (%p320) target = $region56
        $region55: #{tpu_custom_call.1} parent=39 // pred_region
          %324 = dma.done %s317, 16
        $region56: #{tpu_custom_call.1} parent=39 // pred_fallthru
          _
        %p325 = pneg %p57
        %p326 = pneg %p54
        %s327 = sand.u32 %s24, 1
        %s328 = scalar_lea.sflag [#allocation6], %s327
        %s329 = sand.u32 %s70, 1
        %s330 = smul.addr %s329, 16
        %s331 = scalar_lea.vmem [#allocation5], %s330
        %p332 = pneg %p83
        %p333 = pneg %p80
        %s334 = sand.u32 %s24, 1
        %s335 = scalar_lea.sflag [#allocation6], %s334
        %s336 = sand.u32 %s96, 1
        %s337 = scalar_lea.vmem [#allocation7], %s336
        %p338 = pneg %p109
        %p339 = pneg %p106
        %p340 = scmp.lt.s32.totalorder %s29, 1
        %s341 = scalar_select %p340, %s29, 1
        %s342 = scalar_lea.vmem %s3, %s341
        %p343 = pneg %p135
        %p344 = pneg %p132
        %s345 = sand.u32 %s148, 1
        %s346 = scalar_lea.sflag [#allocation9], %s345
        %s347 = sand.u32 %s148, 1
        %s348 = scalar_lea.vmem [#allocation8], %s347
        %p349 = pneg %p161
        %p350 = pneg %p158
        %p351 = pneg %p187
        %p352 = pneg %p184
        %s353 = smul.u32 2, %s28
        %p354 = scmp.lt.s32.totalorder %s29, 1
        %s355 = scalar_select %p354, %s29, 1
        %s356 = scalar_lea.vmem %s3, %s355
        %s357 = smul.u32 2, %s28
        %p359 = scmp.eq.s32.totalorder %s29, 0
        // Predicated region
        $region57: #{tpu_custom_call.1} parent=39 // pred_check
          %p360 = pneg %p359
        $region58: #{tpu_custom_call.1} parent=39 // pred_check_branch
          %362 = sbr.rel (%p360) target = $region60
        $region59: #{tpu_custom_call.1} parent=39 // pred_region
          %v363 = vld [vmem:[#allocation2] sm:$0xff]
          %v364 = vld [vmem:[#allocation2 + $0x8] sm:$0xff]
          %vm365 = vcmask 261120
          %366 = vst.msk [vmem:[#allocation10] sm:$0xff] %vm365, %v363
          %367 = vst.msk [vmem:[#allocation10 + $0x8] sm:$0xff] %vm365, %v364
        $region60: #{tpu_custom_call.1} parent=39 // pred_fallthru
          _
        %v368 = vld [vmem:[#allocation10] sm:$0xff]
        %v369 = vld [vmem:[#allocation10 + $0x8] sm:$0xff]
        %v370 = vpack.c.bf16 %v369, %v368
        %v371 = vld [vmem:[%s301] sm:$0xf]
        %v372 = vld [vmem:[%s301 + $0x4] sm:$0xf]
        %v373 = vld [vmem:[%s301 + $0x8] sm:$0xf]
        %v374 = vld [vmem:[%s301 + $0xc] sm:$0xf]
        %v375 = vld [vmem:[%s310] sm:$0x1]
        %v377 = vperm.slane %v375, 0
        %v383 = vunpack.c.l.b16 %v371
        %v384 = vunpack.c.l.b16 %v372
        %v385 = vunpack.c.l.b16 %v373
        %v386 = vunpack.c.l.b16 %v374
        %v387 = vpack.c.b16 %v384, %v383
        %v388 = vpack.c.b16 %v386, %v385
        %vm391 = vcmask 261120
        %v393 = vsel %vm391, %v370, 0
        %395 = vmatpush.bf16.msra.mxu0 0
        %396 = vmatpush.bf16.msra.mxu0 0
        %397 = vmatpush.bf16.msra.mxu0 0
        %398 = vmatpush.bf16.msra.mxu0 0
        %399 = vmatpush.bf16.msra.mxu0 0
        %400 = vmatpush.bf16.msra.mxu0 0
        %401 = vmatpush.bf16.msra.mxu0 %v388
        %402 = vmatpush.bf16.msra.mxu0 %v387
        %403 = vmatmul.bf16.gmra.mxu0 %v393
        %v404 = vpop.f32.mrf.mxu0
        %v405 = vadd.f32 %v377, %v404
        %v406 = vpop.f32.mrf.mxu0
        %v407 = vadd.f32 %v377, %v406
        %408 = vdwg.mxu0
        %v409 = vld [vmem:[%s356] sm:$0x1]
        %v411 = vperm.slane %v409, 0
        %v413 = vmul.f32 %v411, %v368
        %v414 = vmul.f32 %v411, %v369
        %v415 = vld [vmem:[%s319] sm:$0x1]
        %v416 = vtanh.pop %v405
        %v417 = vtanh.pop %v407
        %v419 = vperm.slane %v415, 0
        %v421 = vmul.f32 %v419, %v416
        %v422 = vmul.f32 %v419, %v417
        %v423 = vadd.f32 %v413, %v421
        %v424 = vadd.f32 %v414, %v422
        %425 = vst.msk [vmem:[#allocation10] sm:$0xff] %vm391, %v423
        %426 = vst.msk [vmem:[#allocation10 + $0x8] sm:$0xff] %vm391, %v424
        // Predicated region
        $region61: #{tpu_custom_call.1} parent=39 // pred_check
          %p427 = pneg %p184
        $region62: #{tpu_custom_call.1} parent=39 // pred_check_branch
          %429 = sbr.rel (%p427) target = $region64
        $region63: #{tpu_custom_call.1} parent=39 // pred_region
          %s430 = smul.u32 2, %s28
          %432 = vsyncadd [#allocation4], 0
          %s433 = smul.addr %s430, 8
          %s434 = scalar_lea.hbm %s5, %s433
          %s435 = sshll.u32 [#allocation10], 4
          %s436 = int_to_ptr.vmem [resolvable:$true] %s435
          %s437 = sshll.u32 %s434, 4
          %s438 = int_to_ptr.hbm [resolvable:$true] %s437
          %443 = dma.vmem_to_hbm [thread:$0]  %s436, 256, %s438, [#allocation4], 128, 128, 8
        $region64: #{tpu_custom_call.1} parent=39 // pred_fallthru
          _
        // Predicated region
        $region65: #{tpu_custom_call.1} parent=39 // pred_check
          %p444 = pneg %p184
        $region66: #{tpu_custom_call.1} parent=39 // pred_check_branch
          %446 = sbr.rel (%p444) target = $region68
        $region67: #{tpu_custom_call.1} parent=39 // pred_region
          %448 = dma.done [#allocation4], 256
        $region68: #{tpu_custom_call.1} parent=39 // pred_fallthru
          _
      $region40: #{tpu_custom_call.1} parent=5 // pred_fallthru
        _
      %p449 = scmp.le.s32.totalorder 2, %s19
      // Predicated region
      $region69: #{tpu_custom_call.1} parent=5 // pred_check
        %p450 = pneg %p449
      $region70: #{tpu_custom_call.1} parent=5 // pred_check_branch
        %452 = sbr.rel (%p450) target = $region72
      $region71: #{tpu_custom_call.1} parent=5 // pred_region
        %s453 = ssub.s32 %s19, 2
      $region72: #{tpu_custom_call.1} parent=5 // pred_fallthru
        _
    $region6: #{tpu_custom_call.1} parent=1 // loop_footer
      %s23 = sadd.s32 1, %s19
    $region7: #{tpu_custom_call.1} parent=1 // loop_footer_branch
      %18 = sbr.rel target = $region3
    $region8: #{tpu_custom_call.1} parent=1 // loop_exit
      _
    %454 = vsyncpa [#allocation3], 1
    %s455 = scalar_lea.sflag [#allocation3], 1
    %456 = vsyncpa %s455, 1
    %457 = vsyncpa [#allocation6], 1
    %s458 = scalar_lea.sflag [#allocation6], 1
    %459 = vsyncpa %s458, 1
    %460 = vsyncpa [#allocation9], 1
    %s461 = scalar_lea.sflag [#allocation9], 1
    %462 = vsyncpa %s461, 1
    %463 = vsyncpa [#allocation4], 1
    %s464 = scalar_lea.sflag [#allocation4], 1
    %465 = vsyncpa %s464, 1

</llo_original>
